<compile_context>
chip_gen: v5e
topology: v5e:2x2
jax: 0.10.0
libtpu: 0.0.40
codegen_flags: <defaults>
</compile_context>

<pallas_src>
import functools

import jax
import jax.numpy as jnp
from jax.experimental import pallas as pl
from jax.experimental.pallas import tpu as pltpu


def _rup(n, m):
    return (n + m - 1) // m * m


def ae_kernel(x_ref, wa_ref, wb_ref, b_ref, loss_ref, z_ref, *, f, F, L, O):
    """One batch tile of the AE forward.

    x_ref   : (tb, F)        f32 input, zero-padded on the feature axis
    wa_ref  : (F + O, L)     bf16, rows [0:F] = w1 (enc1), rows [F:F+O] = w3 (dec1)
    wb_ref  : (L, O + F)     bf16, cols [0:O] = w2 (enc2), cols [O:O+F] = w4 (dec2)
    b_ref   : (1, 2L + O + F) f32 biases packed [b1 | b2 | b3 | b4]
    loss_ref: (1,) or (1,1)  SMEM partial sum of squared error for this tile
    z_ref   : (tb, O)        lane-dense latent slab (padded lanes are 0)
    """
    # bf16 copy for the MXU; the f32 input is re-read later for the loss so it
    # does not stay live across the whole matmul chain.
    xb = x_ref[...].astype(jnp.bfloat16)                      # (tb, F)

    w1 = wa_ref[:F, :]                                        # (F, L)
    w3 = wa_ref[F:F + O, :]                                   # (O, L)
    w2 = wb_ref[:, :O]                                        # (L, O)
    w4 = wb_ref[:, O:O + F]                                   # (L, F)
    b1 = b_ref[:, :L]
    b2 = b_ref[:, L:L + O]
    b3 = b_ref[:, L + O:2 * L + O]
    b4 = b_ref[:, 2 * L + O:]

    # encoder: Linear -> Tanh -> Linear -> Tanh   (nonlinearities in f32)
    h1 = jnp.tanh(jnp.dot(xb, w1, preferred_element_type=jnp.float32) + b1)
    z_lat = jnp.tanh(
        jnp.dot(h1.astype(jnp.bfloat16), w2, preferred_element_type=jnp.float32) + b2)

    # decoder: Linear -> Tanh -> Linear -> Sigmoid
    h2 = jnp.tanh(
        jnp.dot(z_lat.astype(jnp.bfloat16), w3, preferred_element_type=jnp.float32) + b3)
    x_rec = jax.nn.sigmoid(
        jnp.dot(h2.astype(jnp.bfloat16), w4, preferred_element_type=jnp.float32) + b4)

    # Partial MSE numerator: full lane-dense tile + VPU lane mask (no sub-128
    # slices).  Division by B*f happens once, outside.
    diff = x_ref[...] - x_rec                                  # (tb, F) f32
    if f != F:
        lane = jax.lax.broadcasted_iota(jnp.int32, diff.shape, dimension=1)
        diff = jnp.where(lane < f, diff, 0.0)
    sse = jnp.sum(diff * diff)
    if len(loss_ref.shape) == 1:
        loss_ref[0] = sse
    else:
        loss_ref[0, 0] = sse

    # Lane-dense latent store (padded lanes are exactly 0: tanh(0 + 0) = 0).
    z_ref[...] = z_lat.astype(z_ref.dtype)


def _pick_batch_tile(batch, max_tile):
    """Largest batch tile <= max_tile dividing `batch`; >=2 tiles when batch>=16
    so both v7x TensorCores get work (harmless extra grid steps on 1-TC chips)."""
    cap = min(max_tile, batch)
    if batch >= 16:
        cap = min(cap, max(8, (batch // 2) // 8 * 8))
    if batch % 8 == 0 and cap >= 8:
        for tb in range(cap - cap % 8, 7, -8):
            if batch % tb == 0:
                return tb
    return batch  # full-array block (always a legal block shape)


def _vmem_plan(batch, F, L, O):
    """Derive (batch_tile, vmem_limit_bytes) from the chip's VMEM capacity."""
    try:
        phys = int(pltpu.get_tpu_info().vmem_capacity_bytes)
    except Exception:
        phys = 64 << 20  # conservative default (v7x per-TensorCore)
    budget = int(min(phys, 128 << 20) * 0.75)

    # bf16 weight slabs (counted double-buffered to stay safe even without
    # Buffered(1)) + f32 bias slab.
    w_bytes = 2 * (((F + O) * L + L * (O + F)) * 2) + (2 * L + O + F) * 4
    # per-batch-row VMEM: x in (2 bufs, f32) + z out (2 bufs, f32) + intermediates.
    per_row = 2 * F * 4 + 2 * O * 4 + 2 * (F + L + O) * 4

    avail = max(budget - w_bytes - (4 << 20), per_row * 8)
    max_tile = max(8, min(2048, (avail // per_row) // 8 * 8))
    tb = _pick_batch_tile(batch, max_tile)

    need = w_bytes + tb * per_row + (4 << 20)
    vmem_limit = int(min(max(need, 32 << 20), max(phys - (8 << 20), 32 << 20)))
    return tb, vmem_limit


@functools.partial(jax.jit, static_argnames=("conservative",))
def ae_forward(x, params, conservative=False):
    """Returns (loss, z) matching the PyTorch AE.forward semantics."""
    (w1, b1), (w2, b2), (w3, b3), (w4, b4) = params
    B, f = x.shape
    l = w1.shape[1]
    o = w2.shape[1]
    F, L, O = _rup(f, 128), _rup(l, 128), _rup(o, 128)

    def pad2(w, rows, cols):
        if w.shape == (rows, cols):
            return w.astype(jnp.float32)
        return jnp.zeros((rows, cols), jnp.float32).at[:w.shape[0], :w.shape[1]].set(w)

    def padb(b, cols):
        b = b.reshape(1, -1).astype(jnp.float32)
        if b.shape[1] == cols:
            return b
        return jnp.zeros((1, cols), jnp.float32).at[:, :b.shape[1]].set(b)

    # Per-layer zero padding only to live (128-rounded) dims, packed into two
    # bf16 weight slabs + one f32 bias slab => 4 input DMAs, no DxD blow-up.
    wa = jnp.concatenate([pad2(w1, F, L), pad2(w3, O, L)], axis=0).astype(jnp.bfloat16)
    wb = jnp.concatenate([pad2(w2, L, O), pad2(w4, L, F)], axis=1).astype(jnp.bfloat16)
    bb = jnp.concatenate([padb(b1, L), padb(b2, O), padb(b3, L), padb(b4, F)], axis=1)
    x_pad = x if f == F else jnp.pad(x, ((0, 0), (0, F - f)))

    tb, vmem_limit = _vmem_plan(B, F, L, O)
    n_tiles = B // tb

    def const_spec(shape):
        idx = lambda i, _s=shape: (0,) * len(_s)
        if conservative:
            return pl.BlockSpec(shape, idx)
        # Grid-invariant block: single buffer, no pointless double-buffering.
        return pl.BlockSpec(shape, idx, pipeline_mode=pl.Buffered(1))

    if conservative:
        loss_shape, loss_block, loss_index = (n_tiles, 1), (1, 1), (lambda i: (i, 0))
    else:
        loss_shape, loss_block, loss_index = (n_tiles,), (1,), (lambda i: (i,))

    kernel = functools.partial(ae_kernel, f=f, F=F, L=L, O=O)

    partial_sse, z_full = pl.pallas_call(
        kernel,
        grid=(n_tiles,),
        out_shape=(
            jax.ShapeDtypeStruct(loss_shape, jnp.float32),   # per-tile SSE
            jax.ShapeDtypeStruct((B, O), jnp.float32),       # lane-dense latent slab
        ),
        in_specs=[
            pl.BlockSpec((tb, F), lambda i: (i, 0)),
            const_spec((F + O, L)),
            const_spec((L, O + F)),
            const_spec((1, 2 * L + O + F)),
        ],
        out_specs=(
            pl.BlockSpec(loss_block, loss_index, memory_space=pltpu.MemorySpace.SMEM),
            pl.BlockSpec((tb, O), lambda i: (i, 0)),
        ),
        compiler_params=pltpu.CompilerParams(
            dimension_semantics=("parallel",),
            vmem_limit_bytes=vmem_limit,
        ),
    )(x_pad, wa, wb, bb)

    loss = jnp.sum(partial_sse) * (1.0 / (B * f))   # fused under this jit
    z = z_full[:, :o]                               # fused slice of the lane slab
    return loss, z


def init_linear(key, in_features, out_features):
    """Deterministic init mimicking nn.Linear (uniform +/- 1/sqrt(fan_in)).
    Weight returned pre-transposed to (in, out); bias as (1, out)."""
    kw, kb = jax.random.split(key)
    bound = 1.0 / jnp.sqrt(jnp.float32(in_features))
    w = jax.random.uniform(kw, (in_features, out_features),
                           dtype=jnp.float32, minval=-bound, maxval=bound)
    b = jax.random.uniform(kb, (1, out_features),
                           dtype=jnp.float32, minval=-bound, maxval=bound)
    return w, b


def _reference_forward(x, params):
    (w1, b1), (w2, b2), (w3, b3), (w4, b4) = params
    h1 = jnp.tanh(x @ w1 + b1)
    z = jnp.tanh(h1 @ w2 + b2)
    h2 = jnp.tanh(z @ w3 + b3)
    x_rec = jax.nn.sigmoid(h2 @ w4 + b4)
    loss = jnp.mean((x - x_rec) ** 2)
    return loss, z


if __name__ == "__main__":
    feature_size, latent_size, output_size = 32, 16, 8
    batch = 8

    key = jax.random.PRNGKey(0)
    kx, k1, k2, k3, k4 = jax.random.split(key, 5)

    x = jax.random.uniform(kx, (batch, feature_size), dtype=jnp.float32)

    params = (
        init_linear(k1, feature_size, latent_size),   # encoder Linear 1
        init_linear(k2, latent_size, output_size),    # encoder Linear 2
        init_linear(k3, output_size, latent_size),    # decoder Linear 1
        init_linear(k4, latent_size, feature_size),   # decoder Linear 2
    )

    try:
        loss, z = ae_forward(x, params)
        jax.block_until_ready((loss, z))
    except Exception:
        # Fallback: default double-buffering + 2D SMEM loss block.
        loss, z = ae_forward(x, params, conservative=True)
        jax.block_until_ready((loss, z))

    assert loss.shape == () and z.shape == (batch, output_size)

    # Sanity check vs. pure-JAX f32 reference (looser tol: bf16 MXU operands).
    ref_loss, ref_z = _reference_forward(x, params)
    assert jnp.allclose(loss, ref_loss, rtol=2e-2, atol=2e-2)
    assert jnp.allclose(z, ref_z, rtol=2e-2, atol=2e-2)

    print("KERNEL_OK")
</pallas_src>

<mosaic_0001>
module attributes {stable_mosaic.version = 11 : i64} {
  func.func @ae_kernel(%arg0: i32, %arg1: memref<8x128xf32, #tpu.memory_space<vmem>>, %arg2: memref<256x128xbf16, #tpu.memory_space<vmem>>, %arg3: memref<128x256xbf16, #tpu.memory_space<vmem>>, %arg4: memref<1x512xf32, #tpu.memory_space<vmem>>, %arg5: memref<1x1xf32, #tpu.memory_space<smem>>, %arg6: memref<8x128xf32, #tpu.memory_space<vmem>>) attributes {dimension_semantics = [#tpu.dimension_semantics<parallel>], iteration_bounds = array<i64: 1>, scalar_prefetch = 0 : i64, scratch_operands = 0 : i64, tpu.core_type = #tpu.core_type<tc>, window_params = [{transform_indices = @transform_0, window_bounds = array<i64: 8, 128>}, {pipeline_mode = #tpu.pipeline_mode<synchronous>, transform_indices = @transform_1, window_bounds = array<i64: 256, 128>}, {pipeline_mode = #tpu.pipeline_mode<synchronous>, transform_indices = @transform_2, window_bounds = array<i64: 128, 256>}, {pipeline_mode = #tpu.pipeline_mode<synchronous>, transform_indices = @transform_3, window_bounds = array<i64: 1, 512>}, {transform_indices = @transform_4, window_bounds = array<i64: 1, 1>}, {transform_indices = @transform_5, window_bounds = array<i64: 8, 128>}]} {
    %c0 = arith.constant 0 : index
    %c0_0 = arith.constant 0 : index
    %0 = vector.load %arg1[%c0, %c0_0] : memref<8x128xf32, #tpu.memory_space<vmem>>, vector<8x128xf32>
    %1 = arith.truncf %0 : vector<8x128xf32> to vector<8x128xbf16>
    %c0_1 = arith.constant 0 : index
    %c0_2 = arith.constant 0 : index
    %2 = vector.load %arg2[%c0_1, %c0_2] : memref<256x128xbf16, #tpu.memory_space<vmem>>, vector<128x128xbf16>
    %c128 = arith.constant 128 : index
    %c0_3 = arith.constant 0 : index
    %3 = vector.load %arg2[%c128, %c0_3] : memref<256x128xbf16, #tpu.memory_space<vmem>>, vector<128x128xbf16>
    %c0_4 = arith.constant 0 : index
    %c0_5 = arith.constant 0 : index
    %4 = vector.load %arg3[%c0_4, %c0_5] : memref<128x256xbf16, #tpu.memory_space<vmem>>, vector<128x128xbf16>
    %c0_6 = arith.constant 0 : index
    %c128_7 = arith.constant 128 : index
    %5 = vector.load %arg3[%c0_6, %c128_7] : memref<128x256xbf16, #tpu.memory_space<vmem>>, vector<128x128xbf16>
    %c0_8 = arith.constant 0 : index
    %c0_9 = arith.constant 0 : index
    %6 = vector.load %arg4[%c0_8, %c0_9] : memref<1x512xf32, #tpu.memory_space<vmem>>, vector<1x128xf32>
    %c0_10 = arith.constant 0 : index
    %c128_11 = arith.constant 128 : index
    %7 = vector.load %arg4[%c0_10, %c128_11] : memref<1x512xf32, #tpu.memory_space<vmem>>, vector<1x128xf32>
    %c0_12 = arith.constant 0 : index
    %c256 = arith.constant 256 : index
    %8 = vector.load %arg4[%c0_12, %c256] : memref<1x512xf32, #tpu.memory_space<vmem>>, vector<1x128xf32>
    %c0_13 = arith.constant 0 : index
    %c384 = arith.constant 384 : index
    %9 = vector.load %arg4[%c0_13, %c384] : memref<1x512xf32, #tpu.memory_space<vmem>>, vector<1x128xf32>
    %cst = arith.constant dense<0.000000e+00> : vector<8x128xf32>
    %10 = tpu.matmul %1, %2, %cst {dimension_numbers = #tpu.dot_dimension_numbers<[1], [0], [0], [1], [0, 0, 1, 1], [], []>} : vector<8x128xbf16>, vector<128x128xbf16>, vector<8x128xf32> -> vector<8x128xf32>
    %11 = vector.broadcast %6 : vector<1x128xf32> to vector<8x128xf32>
    %12 = arith.addf %10, %11 : vector<8x128xf32>
    %13 = math.tanh %12 : vector<8x128xf32>
    %14 = arith.truncf %13 : vector<8x128xf32> to vector<8x128xbf16>
    %cst_14 = arith.constant dense<0.000000e+00> : vector<8x128xf32>
    %15 = tpu.matmul %14, %4, %cst_14 {dimension_numbers = #tpu.dot_dimension_numbers<[1], [0], [0], [1], [0, 0, 1, 1], [], []>} : vector<8x128xbf16>, vector<128x128xbf16>, vector<8x128xf32> -> vector<8x128xf32>
    %16 = vector.broadcast %7 : vector<1x128xf32> to vector<8x128xf32>
    %17 = arith.addf %15, %16 : vector<8x128xf32>
    %18 = math.tanh %17 : vector<8x128xf32>
    %19 = arith.truncf %18 : vector<8x128xf32> to vector<8x128xbf16>
    %cst_15 = arith.constant dense<0.000000e+00> : vector<8x128xf32>
    %20 = tpu.matmul %19, %3, %cst_15 {dimension_numbers = #tpu.dot_dimension_numbers<[1], [0], [0], [1], [0, 0, 1, 1], [], []>} : vector<8x128xbf16>, vector<128x128xbf16>, vector<8x128xf32> -> vector<8x128xf32>
    %21 = vector.broadcast %8 : vector<1x128xf32> to vector<8x128xf32>
    %22 = arith.addf %20, %21 : vector<8x128xf32>
    %23 = math.tanh %22 : vector<8x128xf32>
    %24 = arith.truncf %23 : vector<8x128xf32> to vector<8x128xbf16>
    %cst_16 = arith.constant dense<0.000000e+00> : vector<8x128xf32>
    %25 = tpu.matmul %24, %5, %cst_16 {dimension_numbers = #tpu.dot_dimension_numbers<[1], [0], [0], [1], [0, 0, 1, 1], [], []>} : vector<8x128xbf16>, vector<128x128xbf16>, vector<8x128xf32> -> vector<8x128xf32>
    %26 = vector.broadcast %9 : vector<1x128xf32> to vector<8x128xf32>
    %27 = arith.addf %25, %26 : vector<8x128xf32>
    %28 = arith.negf %27 : vector<8x128xf32>
    %29 = math.exp %28 : vector<8x128xf32>
    %cst_17 = arith.constant 1.000000e+00 : f32
    %30 = vector.broadcast %cst_17 : f32 to vector<8x128xf32>
    %31 = arith.addf %30, %29 : vector<8x128xf32>
    %32 = arith.divf %30, %31 : vector<8x128xf32>
    %c0_18 = arith.constant 0 : index
    %c0_19 = arith.constant 0 : index
    %33 = vector.load %arg1[%c0_18, %c0_19] : memref<8x128xf32, #tpu.memory_space<vmem>>, vector<8x128xf32>
    %34 = arith.subf %33, %32 : vector<8x128xf32>
    %35 = tpu.iota {dimensions = array<i32: 1>} : vector<8x128xi32>
    %c32_i32 = arith.constant 32 : i32
    %36 = vector.broadcast %c32_i32 : i32 to vector<8x128xi32>
    %37 = arith.cmpi slt, %35, %36 : vector<8x128xi32>
    %cst_20 = arith.constant 0.000000e+00 : f32
    %38 = vector.broadcast %cst_20 : f32 to vector<8x128xf32>
    %39 = arith.select %37, %34, %38 : vector<8x128xi1>, vector<8x128xf32>
    %40 = arith.mulf %39, %39 : vector<8x128xf32>
    %41 = vector.shape_cast %40 : vector<8x128xf32> to vector<1x8x128xf32>
    %cst_21 = arith.constant dense<0.000000e+00> : vector<1xf32>
    %42 = vector.multi_reduction <add>, %41, %cst_21 [1, 2] : vector<1x8x128xf32> to vector<1xf32>
    %43 = vector.shape_cast %42 : vector<1xf32> to vector<1x1x1xf32>
    %44 = vector.extract %43[0, 0, 0] : f32 from vector<1x1x1xf32>
    %c0_22 = arith.constant 0 : index
    %c0_23 = arith.constant 0 : index
    %45 = memref.load %arg5[%c0_22, %c0_23] : memref<1x1xf32, #tpu.memory_space<smem>>
    memref.store %44, %arg5[%c0_22, %c0_23] : memref<1x1xf32, #tpu.memory_space<smem>>
    %c0_24 = arith.constant 0 : index
    %c0_25 = arith.constant 0 : index
    %46 = vector.load %arg6[%c0_24, %c0_25] : memref<8x128xf32, #tpu.memory_space<vmem>>, vector<8x128xf32>
    tpu.vector_store %arg6[%c0_24, %c0_25], %18 {strides = array<i32>} : memref<8x128xf32, #tpu.memory_space<vmem>>, vector<8x128xf32>,
    return
  }
  func.func @transform_0(%arg0: i32) -> (i32, i32) {
    %c0_i32 = arith.constant 0 : i32
    %c0_i32_0 = arith.constant 0 : i32
    return %arg0, %c0_i32 : i32, i32
  }
  func.func @transform_1(%arg0: i32) -> (i32, i32) {
    %c0_i32 = arith.constant 0 : i32
    %c0_i32_0 = arith.constant 0 : i32
    %c0_i32_1 = arith.constant 0 : i32
    return %c0_i32, %c0_i32_0 : i32, i32
  }
  func.func @transform_2(%arg0: i32) -> (i32, i32) {
    %c0_i32 = arith.constant 0 : i32
    %c0_i32_0 = arith.constant 0 : i32
    %c0_i32_1 = arith.constant 0 : i32
    return %c0_i32, %c0_i32_0 : i32, i32
  }
  func.func @transform_3(%arg0: i32) -> (i32, i32) {
    %c0_i32 = arith.constant 0 : i32
    %c0_i32_0 = arith.constant 0 : i32
    %c0_i32_1 = arith.constant 0 : i32
    return %c0_i32, %c0_i32_0 : i32, i32
  }
  func.func @transform_4(%arg0: i32) -> (i32, i32) {
    %c0_i32 = arith.constant 0 : i32
    %c0_i32_0 = arith.constant 0 : i32
    return %arg0, %c0_i32 : i32, i32
  }
  func.func @transform_5(%arg0: i32) -> (i32, i32) {
    %c0_i32 = arith.constant 0 : i32
    %c0_i32_0 = arith.constant 0 : i32
    return %arg0, %c0_i32 : i32, i32
  }
}

</mosaic_0001>

<llo_original>
// kernel: ae_forward.1
$region0: #{ae_forward.1}
  #allocation0 [shape = 'u32[]', space=smem, size = 0x4, offset = 0x4, fixed_abs, tag = 'smem constant byte address 0x4 - core index']
  #allocation1 [shape = 'u32[72,128]{1,0:T(1,128)}', space=vmem, size = 0x9000, scoped, tag = 'internal scratch']
  %s0 = inlined_call_operand.vmem [shape: f32[8,128], index: 0, kind: input, shape index: {}]
  %s1 = inlined_call_operand.vmem [shape: bf16[256,128], index: 1, kind: input, shape index: {}]
  %s2 = inlined_call_operand.vmem [shape: bf16[128,256], index: 2, kind: input, shape index: {}]
  %s3 = inlined_call_operand.vmem [shape: f32[1,512], index: 3, kind: input, shape index: {}]
  %s4 = inlined_call_operand.hbm [shape: f32[1,1], index: 4, kind: output, shape index: {0}]
  %s5 = inlined_call_operand.hbm [shape: f32[8,128], index: 5, kind: output, shape index: {1}]
  %6 = xla_tuple %s4, %s5
  %s7 = sld [smem:[#allocation0]]
  $region34: #{ae_forward.1} parent=0
    _
  %s9 = ssub.s32 1, %s7
  %s10 = scalar_select 0, %s9, %s7
  $region1: #{ae_forward.1} parent=0
    #allocation2 [shape = 'u8[512]{0}', space=smem, size = 0x200, scoped, tag = 'output window, operand 0, single buffered']
    #allocation3 [shape = 's32[1]{0}', space=sflag, size = 0x4, scoped, tag = 'scoped memory for ae_forward.1']
    #allocation4 [shape = 's32[1]{0}', space=sflag, size = 0x4, scoped, tag = 'scoped memory for ae_forward.1']
    #allocation5 [shape = 'u8[4096]{0}', space=vmem, size = 0x1000, scoped, tag = 'output window, operand 1, single buffered']
    %11 = vsyncpa [#allocation4], 0
    %12 = vsyncpa [#allocation3], 0
    // Predicated region
    $region2: #{ae_forward.1} parent=1 // pred_check
      _
    $region3: #{ae_forward.1} parent=1 // pred_check_branch
      %14 = sbr.rel (0) target = $region5
    $region4: #{ae_forward.1} parent=1 // pred_region
      _
    $region5: #{ae_forward.1} parent=1 // pred_fallthru
      _
    // Predicated region
    $region6: #{ae_forward.1} parent=1 // pred_check
      _
    $region7: #{ae_forward.1} parent=1 // pred_check_branch
      %16 = sbr.rel (0) target = $region9
    $region8: #{ae_forward.1} parent=1 // pred_region
      _
    $region9: #{ae_forward.1} parent=1 // pred_fallthru
      _
    // Predicated region
    $region10: #{ae_forward.1} parent=1 // pred_check
      _
    $region11: #{ae_forward.1} parent=1 // pred_check_branch
      %18 = sbr.rel (0) target = $region13
    $region12: #{ae_forward.1} parent=1 // pred_region
      _
    $region13: #{ae_forward.1} parent=1 // pred_fallthru
      _
    // Predicated region
    $region14: #{ae_forward.1} parent=1 // pred_check
      _
    $region15: #{ae_forward.1} parent=1 // pred_check_branch
      %20 = sbr.rel (0) target = $region17
    $region16: #{ae_forward.1} parent=1 // pred_region
      _
    $region17: #{ae_forward.1} parent=1 // pred_fallthru
      _
    %v21 = vld [vmem:[%s0] sm:$0xff]
    %v22 = vpack.c.bf16 %v21, %v21
    %v23 = vld [vmem:[%s1] sm:$0xf]
    %v24 = vld [vmem:[%s1 + $0x4] sm:$0xf]
    %v25 = vld [vmem:[%s1 + $0x8] sm:$0xf]
    %v26 = vld [vmem:[%s1 + $0xc] sm:$0xf]
    %v27 = vld [vmem:[%s1 + $0x10] sm:$0xf]
    %v28 = vld [vmem:[%s1 + $0x14] sm:$0xf]
    %v29 = vld [vmem:[%s1 + $0x18] sm:$0xf]
    %v30 = vld [vmem:[%s1 + $0x1c] sm:$0xf]
    %v31 = vld [vmem:[%s1 + $0x20] sm:$0xf]
    %v32 = vld [vmem:[%s1 + $0x24] sm:$0xf]
    %v33 = vld [vmem:[%s1 + $0x28] sm:$0xf]
    %v34 = vld [vmem:[%s1 + $0x2c] sm:$0xf]
    %v35 = vld [vmem:[%s1 + $0x30] sm:$0xf]
    %v36 = vld [vmem:[%s1 + $0x34] sm:$0xf]
    %v37 = vld [vmem:[%s1 + $0x38] sm:$0xf]
    %v38 = vld [vmem:[%s1 + $0x3c] sm:$0xf]
    %v39 = vld [vmem:[%s1 + $0x40] sm:$0xf]
    %v40 = vld [vmem:[%s1 + $0x44] sm:$0xf]
    %v41 = vld [vmem:[%s1 + $0x48] sm:$0xf]
    %v42 = vld [vmem:[%s1 + $0x4c] sm:$0xf]
    %v43 = vld [vmem:[%s1 + $0x50] sm:$0xf]
    %v44 = vld [vmem:[%s1 + $0x54] sm:$0xf]
    %v45 = vld [vmem:[%s1 + $0x58] sm:$0xf]
    %v46 = vld [vmem:[%s1 + $0x5c] sm:$0xf]
    %v47 = vld [vmem:[%s1 + $0x60] sm:$0xf]
    %v48 = vld [vmem:[%s1 + $0x64] sm:$0xf]
    %v49 = vld [vmem:[%s1 + $0x68] sm:$0xf]
    %v50 = vld [vmem:[%s1 + $0x6c] sm:$0xf]
    %v51 = vld [vmem:[%s1 + $0x70] sm:$0xf]
    %v52 = vld [vmem:[%s1 + $0x74] sm:$0xf]
    %v53 = vld [vmem:[%s1 + $0x78] sm:$0xf]
    %v54 = vld [vmem:[%s1 + $0x7c] sm:$0xf]
    %v55 = vld [vmem:[%s2] sm:$0xf]
    %v56 = vld [vmem:[%s2 + $0x8] sm:$0xf]
    %v57 = vld [vmem:[%s2 + $0x10] sm:$0xf]
    %v58 = vld [vmem:[%s2 + $0x18] sm:$0xf]
    %v59 = vld [vmem:[%s2 + $0x20] sm:$0xf]
    %v60 = vld [vmem:[%s2 + $0x28] sm:$0xf]
    %v61 = vld [vmem:[%s2 + $0x30] sm:$0xf]
    %v62 = vld [vmem:[%s2 + $0x38] sm:$0xf]
    %v63 = vld [vmem:[%s2 + $0x40] sm:$0xf]
    %v64 = vld [vmem:[%s2 + $0x48] sm:$0xf]
    %v65 = vld [vmem:[%s2 + $0x50] sm:$0xf]
    %v66 = vld [vmem:[%s2 + $0x58] sm:$0xf]
    %v67 = vld [vmem:[%s2 + $0x60] sm:$0xf]
    %v68 = vld [vmem:[%s2 + $0x68] sm:$0xf]
    %v69 = vld [vmem:[%s2 + $0x70] sm:$0xf]
    %v70 = vld [vmem:[%s2 + $0x78] sm:$0xf]
    %v71 = vld [vmem:[%s2 + $0x4] sm:$0xf]
    %v72 = vld [vmem:[%s2 + $0xc] sm:$0xf]
    %v73 = vld [vmem:[%s2 + $0x14] sm:$0xf]
    %v74 = vld [vmem:[%s2 + $0x1c] sm:$0xf]
    %v75 = vld [vmem:[%s2 + $0x24] sm:$0xf]
    %v76 = vld [vmem:[%s2 + $0x2c] sm:$0xf]
    %v77 = vld [vmem:[%s2 + $0x34] sm:$0xf]
    %v78 = vld [vmem:[%s2 + $0x3c] sm:$0xf]
    %v79 = vld [vmem:[%s2 + $0x44] sm:$0xf]
    %v80 = vld [vmem:[%s2 + $0x4c] sm:$0xf]
    %v81 = vld [vmem:[%s2 + $0x54] sm:$0xf]
    %v82 = vld [vmem:[%s2 + $0x5c] sm:$0xf]
    %v83 = vld [vmem:[%s2 + $0x64] sm:$0xf]
    %v84 = vld [vmem:[%s2 + $0x6c] sm:$0xf]
    %v85 = vld [vmem:[%s2 + $0x74] sm:$0xf]
    %v86 = vld [vmem:[%s2 + $0x7c] sm:$0xf]
    %v87 = vld [vmem:[%s3] sm:$0x1]
    %v88 = vld [vmem:[%s3 + $0x1] sm:$0x1]
    %v89 = vld [vmem:[%s3 + $0x2] sm:$0x1]
    %v90 = vld [vmem:[%s3 + $0x3] sm:$0x1]
    %v92 = vperm.slane %v87, 0
    %v110 = vunpack.c.l.b16 %v23
    %v111 = vunpack.c.l.b16 %v24
    %v112 = vunpack.c.l.b16 %v25
    %v113 = vunpack.c.l.b16 %v26
    %v114 = vunpack.c.l.b16 %v27
    %v115 = vunpack.c.l.b16 %v28
    %v116 = vunpack.c.l.b16 %v29
    %v117 = vunpack.c.l.b16 %v30
    %v118 = vunpack.c.l.b16 %v31
    %v119 = vunpack.c.l.b16 %v32
    %v120 = vunpack.c.l.b16 %v33
    %v121 = vunpack.c.l.b16 %v34
    %v122 = vunpack.c.l.b16 %v35
    %v123 = vunpack.c.l.b16 %v36
    %v124 = vunpack.c.l.b16 %v37
    %v125 = vunpack.c.l.b16 %v38
    %v126 = vpack.c.b16 %v111, %v110
    %v127 = vpack.c.b16 %v113, %v112
    %v128 = vpack.c.b16 %v115, %v114
    %v129 = vpack.c.b16 %v117, %v116
    %v130 = vpack.c.b16 %v119, %v118
    %v131 = vpack.c.b16 %v121, %v120
    %v132 = vpack.c.b16 %v123, %v122
    %v133 = vpack.c.b16 %v125, %v124
    %142 = vmatpush.bf16.msra.mxu0 %v133
    %143 = vmatpush.bf16.msra.mxu0 %v132
    %144 = vmatpush.bf16.msra.mxu0 %v131
    %145 = vmatpush.bf16.msra.mxu0 %v130
    %146 = vmatpush.bf16.msra.mxu0 %v129
    %147 = vmatpush.bf16.msra.mxu0 %v128
    %148 = vmatpush.bf16.msra.mxu0 %v127
    %149 = vmatpush.bf16.msra.mxu0 %v126
    %150 = vmatmul.bf16.gmra.mxu0 %v22
    %v151 = vpop.f32.mrf.mxu0
    %v152 = vadd.f32 %v92, %v151
    %v153 = vpop.f32.mrf.mxu0
    %154 = vdwg.mxu0
    %v155 = vtanh.pop %v152
    %v156 = vpack.c.bf16 %v155, %v155
    %v158 = vperm.slane %v88, 0
    %v176 = vunpack.c.l.b16 %v55
    %v177 = vunpack.c.l.b16 %v56
    %v178 = vunpack.c.l.b16 %v57
    %v179 = vunpack.c.l.b16 %v58
    %v180 = vunpack.c.l.b16 %v59
    %v181 = vunpack.c.l.b16 %v60
    %v182 = vunpack.c.l.b16 %v61
    %v183 = vunpack.c.l.b16 %v62
    %v184 = vunpack.c.l.b16 %v63
    %v185 = vunpack.c.l.b16 %v64
    %v186 = vunpack.c.l.b16 %v65
    %v187 = vunpack.c.l.b16 %v66
    %v188 = vunpack.c.l.b16 %v67
    %v189 = vunpack.c.l.b16 %v68
    %v190 = vunpack.c.l.b16 %v69
    %v191 = vunpack.c.l.b16 %v70
    %v192 = vpack.c.b16 %v177, %v176
    %v193 = vpack.c.b16 %v179, %v178
    %v194 = vpack.c.b16 %v181, %v180
    %v195 = vpack.c.b16 %v183, %v182
    %v196 = vpack.c.b16 %v185, %v184
    %v197 = vpack.c.b16 %v187, %v186
    %v198 = vpack.c.b16 %v189, %v188
    %v199 = vpack.c.b16 %v191, %v190
    %208 = vmatpush.bf16.msra.mxu0 %v199
    %209 = vmatpush.bf16.msra.mxu0 %v198
    %210 = vmatpush.bf16.msra.mxu0 %v197
    %211 = vmatpush.bf16.msra.mxu0 %v196
    %212 = vmatpush.bf16.msra.mxu0 %v195
    %213 = vmatpush.bf16.msra.mxu0 %v194
    %214 = vmatpush.bf16.msra.mxu0 %v193
    %215 = vmatpush.bf16.msra.mxu0 %v192
    %216 = vmatmul.bf16.gmra.mxu0 %v156
    %v217 = vpop.f32.mrf.mxu0
    %v218 = vadd.f32 %v158, %v217
    %v219 = vpop.f32.mrf.mxu0
    %220 = vdwg.mxu0
    %v221 = vtanh.pop %v218
    %v222 = vpack.c.bf16 %v221, %v221
    %v224 = vperm.slane %v89, 0
    %v242 = vunpack.c.l.b16 %v39
    %v243 = vunpack.c.l.b16 %v40
    %v244 = vunpack.c.l.b16 %v41
    %v245 = vunpack.c.l.b16 %v42
    %v246 = vunpack.c.l.b16 %v43
    %v247 = vunpack.c.l.b16 %v44
    %v248 = vunpack.c.l.b16 %v45
    %v249 = vunpack.c.l.b16 %v46
    %v250 = vunpack.c.l.b16 %v47
    %v251 = vunpack.c.l.b16 %v48
    %v252 = vunpack.c.l.b16 %v49
    %v253 = vunpack.c.l.b16 %v50
    %v254 = vunpack.c.l.b16 %v51
    %v255 = vunpack.c.l.b16 %v52
    %v256 = vunpack.c.l.b16 %v53
    %v257 = vunpack.c.l.b16 %v54
    %v258 = vpack.c.b16 %v243, %v242
    %v259 = vpack.c.b16 %v245, %v244
    %v260 = vpack.c.b16 %v247, %v246
    %v261 = vpack.c.b16 %v249, %v248
    %v262 = vpack.c.b16 %v251, %v250
    %v263 = vpack.c.b16 %v253, %v252
    %v264 = vpack.c.b16 %v255, %v254
    %v265 = vpack.c.b16 %v257, %v256
    %274 = vmatpush.bf16.msra.mxu0 %v265
    %275 = vmatpush.bf16.msra.mxu0 %v264
    %276 = vmatpush.bf16.msra.mxu0 %v263
    %277 = vmatpush.bf16.msra.mxu0 %v262
    %278 = vmatpush.bf16.msra.mxu0 %v261
    %279 = vmatpush.bf16.msra.mxu0 %v260
    %280 = vmatpush.bf16.msra.mxu0 %v259
    %281 = vmatpush.bf16.msra.mxu0 %v258
    %282 = vmatmul.bf16.gmra.mxu0 %v222
    %v283 = vpop.f32.mrf.mxu0
    %v284 = vadd.f32 %v224, %v283
    %v285 = vpop.f32.mrf.mxu0
    %286 = vdwg.mxu0
    %v287 = vtanh.pop %v284
    %v288 = vpack.c.bf16 %v287, %v287
    %v290 = vperm.slane %v90, 0
    %v308 = vunpack.c.l.b16 %v71
    %v309 = vunpack.c.l.b16 %v72
    %v310 = vunpack.c.l.b16 %v73
    %v311 = vunpack.c.l.b16 %v74
    %v312 = vunpack.c.l.b16 %v75
    %v313 = vunpack.c.l.b16 %v76
    %v314 = vunpack.c.l.b16 %v77
    %v315 = vunpack.c.l.b16 %v78
    %v316 = vunpack.c.l.b16 %v79
    %v317 = vunpack.c.l.b16 %v80
    %v318 = vunpack.c.l.b16 %v81
    %v319 = vunpack.c.l.b16 %v82
    %v320 = vunpack.c.l.b16 %v83
    %v321 = vunpack.c.l.b16 %v84
    %v322 = vunpack.c.l.b16 %v85
    %v323 = vunpack.c.l.b16 %v86
    %v324 = vpack.c.b16 %v309, %v308
    %v325 = vpack.c.b16 %v311, %v310
    %v326 = vpack.c.b16 %v313, %v312
    %v327 = vpack.c.b16 %v315, %v314
    %v328 = vpack.c.b16 %v317, %v316
    %v329 = vpack.c.b16 %v319, %v318
    %v330 = vpack.c.b16 %v321, %v320
    %v331 = vpack.c.b16 %v323, %v322
    %340 = vmatpush.bf16.msra.mxu0 %v331
    %341 = vmatpush.bf16.msra.mxu0 %v330
    %342 = vmatpush.bf16.msra.mxu0 %v329
    %343 = vmatpush.bf16.msra.mxu0 %v328
    %344 = vmatpush.bf16.msra.mxu0 %v327
    %345 = vmatpush.bf16.msra.mxu0 %v326
    %346 = vmatpush.bf16.msra.mxu0 %v325
    %347 = vmatpush.bf16.msra.mxu0 %v324
    %348 = vmatmul.bf16.gmra.mxu0 %v288
    %v349 = vpop.f32.mrf.mxu0
    %v350 = vadd.f32 %v290, %v349
    %v351 = vpop.f32.mrf.mxu0
    %352 = vdwg.mxu0
    %v353 = vxor.u32 %v350, 2147483648
    %v354 = vmul.f32 %v353, 1.442695
    %v355 = vpow.pop %v354
    %v356 = vadd.f32 %v355, 1.0
    %v357 = vrcp.pop %v356
    %v358 = vmul.f32 %v356, %v357
    %v359 = vsub.f32 1.0, %v358
    %v360 = vmul.f32 %v357, %v359
    %v361 = vadd.f32 %v357, %v360
    %vm362 = vweird.f32 %v356
    %vm363 = vweird.f32 %v357
    %vm364 = vmor %vm362, %vm363
    %v365 = vsel %vm364, %v357, %v361
    %v366 = vand.u32 2147483647, %v356
    %vm367 = vcmp.eq.f32.partialorder %v366, 8.507059e+37
    %v368 = vand.u32 %v356, 2147483648
    %v369 = vor.u32 1.1754944e-38, %v368
    %v370 = vsel %vm367, %v369, %v365
    %v371 = vmul.f32 1.0, %v370
    %v372 = vsub.f32 %v21, %v371
    %v373 = vlaneseq
    %v374 = vand.u32 %v373, 127
    %vm375 = vcmp.lt.s32.totalorder %v374, 32
    %v376 = vsel %vm375, %v372, 0.0
    %v377 = vmul.f32 %v376, %v376
    %378 = vadd.xlane.f32.xlu0 %v377
    %v379 = vpop.xlane.xlu0 %378
    %v380 = vrot.slane %v379, 4
    %v381 = vadd.f32 %v379, %v380
    %v382 = vrot.slane %v381, 2
    %v383 = vadd.f32 %v381, %v382
    %v384 = vrot.slane %v383, 1
    %v385 = vadd.f32 %v383, %v384
    %s386 = vtos %v385
    %s387 = scalar_lea.smem [#allocation2], 0
    %388 = sst [smem:[%s387]] %s386
    %389 = vst [vmem:[#allocation5] sm:$0xff] %v221
    // Predicated region
    $region18: #{ae_forward.1} parent=1 // pred_check
      _
    $region19: #{ae_forward.1} parent=1 // pred_check_branch
      %391 = sbr.rel (0) target = $region21
    $region20: #{ae_forward.1} parent=1 // pred_region
      %393 = vsyncadd [#allocation4], 0
      %s395 = sshll.u32 %s4, 4
      %s396 = int_to_ptr.hbm [resolvable:$true] %s395
      %398 = dma.smem_to_hbm [#allocation2], 16, %s396, [#allocation4]
    $region21: #{ae_forward.1} parent=1 // pred_fallthru
      _
    // Predicated region
    $region22: #{ae_forward.1} parent=1 // pred_check
      _
    $region23: #{ae_forward.1} parent=1 // pred_check_branch
      %400 = sbr.rel (0) target = $region25
    $region24: #{ae_forward.1} parent=1 // pred_region
      %402 = vsyncadd [#allocation3], 0
      %s404 = sshll.u32 [#allocation5], 4
      %s405 = int_to_ptr.vmem [resolvable:$true] %s404
      %s406 = sshll.u32 %s5, 4
      %s407 = int_to_ptr.hbm [resolvable:$true] %s406
      %409 = dma.vmem_to_hbm [thread:$0]  %s405, 128, %s407, [#allocation3]
    $region25: #{ae_forward.1} parent=1 // pred_fallthru
      _
    // Predicated region
    $region26: #{ae_forward.1} parent=1 // pred_check
      _
    $region27: #{ae_forward.1} parent=1 // pred_check_branch
      %411 = sbr.rel (0) target = $region29
    $region28: #{ae_forward.1} parent=1 // pred_region
      %413 = dma.done [#allocation4], 16
    $region29: #{ae_forward.1} parent=1 // pred_fallthru
      _
    // Predicated region
    $region30: #{ae_forward.1} parent=1 // pred_check
      _
    $region31: #{ae_forward.1} parent=1 // pred_check_branch
      %415 = sbr.rel (0) target = $region33
    $region32: #{ae_forward.1} parent=1 // pred_region
      %417 = dma.done [#allocation3], 128
    $region33: #{ae_forward.1} parent=1 // pred_fallthru
      _
    %418 = sfence
    %419 = vsyncpa [#allocation3], 1
    %420 = vsyncpa [#allocation4], 1

</llo_original>
